<compile_context>
chip_gen: v5e
topology: v5e:2x2
jax: 0.10.0
libtpu: 0.0.40
codegen_flags: <defaults>
</compile_context>

<pallas_src>
import functools

import jax
import jax.numpy as jnp
from jax import lax
from jax.experimental import pallas as pl
from jax.experimental.pallas import tpu as pltpu


def _round_up(x, m):
    return (x + m - 1) // m * m


def _tpu_vmem_capacity_bytes():
    """Best-effort VMEM capacity query (falls back to 128 MiB = v5e/v6e)."""
    try:
        return int(pltpu.get_tpu_info().vmem_capacity_bytes)
    except Exception:
        return 128 * 1024 * 1024


def _clip_kernel(scale_ref, pix_ref, w_ref, txt_ref, lab_ref,
                 scores_ref, loss_ref, acc_ref, *, num_labels):
    """Grid = (batch tiles, K tiles). acc_ref accumulates image features."""
    k = pl.program_id(1)

    # --- init accumulator at the start of the K reduction -------------------
    @pl.when(k == 0)
    def _():
        acc_ref[...] = jnp.zeros_like(acc_ref)

    # --- synthetic get_image_features: streamed projection on the MXU -------
    # Pixels arrive f32 (no wrapper pad/cast copy); cast to bf16 here so the
    # MXU runs bf16 x bf16 with f32 accumulation.
    acc_ref[...] += jnp.dot(pix_ref[...].astype(jnp.bfloat16), w_ref[...],
                            preferred_element_type=jnp.float32)

    # --- finalize: normalize, similarity scores, per-row CE terms -----------
    @pl.when(k == pl.num_programs(1) - 1)
    def _():
        img = acc_ref[...]                                          # (tb, D) f32
        # L2 normalize via rsqrt (EUP); tiny eps keeps zero-padded rows finite.
        inv_norm = lax.rsqrt(
            jnp.sum(img * img, axis=-1, keepdims=True) + jnp.float32(1e-30))
        norm_img = (img * inv_norm).astype(jnp.bfloat16)            # (tb, D) bf16

        # scores = norm_img @ norm_text.T * exp(logit_scale); the text block is
        # pre-transposed to (D, Lp) in the wrapper so this is a canonical
        # (M,K)x(K,N) MXU feed with the label axis lane-dense.
        scale = scale_ref[0]
        scores = jnp.dot(norm_img, txt_ref[...],
                         preferred_element_type=jnp.float32) * scale  # (tb, Lp)
        scores_ref[...] = scores

        # Cross-entropy terms per row: logsumexp(real columns) - picked score.
        tb, lp = scores.shape
        col = lax.broadcasted_iota(jnp.int32, (tb, lp), 1)
        masked = jnp.where(col < num_labels, scores, jnp.float32(-1e30))
        m = jnp.max(masked, axis=-1, keepdims=True)
        lse = m + jnp.log(jnp.sum(jnp.exp(masked - m), axis=-1, keepdims=True))
        # label_ids < num_labels by construction (the module builds label2id),
        # so picking from the unmasked scores is safe.
        one_hot = (col == lab_ref[...]).astype(jnp.float32)         # (tb, Lp)
        picked = jnp.sum(scores * one_hot, axis=-1, keepdims=True)  # (tb, 1)
        # Lane-dense (tb, 128) output -> unmasked vector stores; wrapper
        # consumes lane 0 only.
        loss_ref[...] = jnp.broadcast_to(lse - picked, loss_ref.shape)


def prepare_clip_retriever(w_img, text_emb, logit_scale, *, tk=2048):
    """One-time parameter preparation (do once, reuse across forward calls).

    Mirrors the module caching generate_labels_embeddings(): normalizes and
    transposes the text embeddings to (D, Lp) bf16, pads + casts the synthetic
    image-projection weight to (Kp, D) bf16, and exponentiates logit_scale, so
    the per-call hot path streams bf16 weights straight from HBM with no extra
    pad/cast copies.
    """
    CHW, D = w_img.shape
    L = text_emb.shape[0]

    tk = min(tk, _round_up(CHW, 128))         # lane-dense contraction tile
    Kp = _round_up(CHW, tk)
    Lp = _round_up(L, 128)                    # lane-dense scores / label axis

    w = w_img.astype(jnp.float32)
    if Kp != CHW:
        w = jnp.pad(w, ((0, Kp - CHW), (0, 0)))
    w = w.astype(jnp.bfloat16)                # (Kp, D)

    txt = text_emb.astype(jnp.float32)
    txt = txt / jnp.linalg.norm(txt, axis=-1, keepdims=True)
    if Lp != L:
        txt = jnp.pad(txt, ((0, Lp - L), (0, 0)))
    txt_t = txt.T.astype(jnp.bfloat16)        # (D, Lp), label axis lane-dense

    scale_exp = jnp.exp(jnp.asarray(logit_scale, jnp.float32)).reshape(1,)

    return dict(w=w, txt_t=txt_t, scale_exp=scale_exp,
                tk=tk, Kp=Kp, CHW=CHW, D=D, L=L, Lp=Lp)


def clip_label_retriever(prepared, pixel_values, label_ids, *, tb=256):
    """Returns (score_tensor, loss) matching CLIPLabelRetriever.forward."""
    B, C, H, W = pixel_values.shape
    CHW, Kp, tk = prepared["CHW"], prepared["Kp"], prepared["tk"]
    D, L, Lp = prepared["D"], prepared["L"], prepared["Lp"]
    assert C * H * W == CHW, "pixel_values inconsistent with prepared weights"

    # Generation-aware VMEM budgeting (v7x: 64 MiB/TC; v5e/v6e: 128 MiB).
    vmem_cap = _tpu_vmem_capacity_bytes()
    vmem_limit = min(vmem_cap * 3 // 4, 100 * 1024 * 1024)
    two_cores = vmem_cap <= 80 * 1024 * 1024   # 64 MiB VMEM/TC is the v7x signature

    # Batch tile: big (fills the MXU rows, minimizes weight re-streaming) but
    # on 2-TC parts keep at least two batch tiles so the "parallel" axis can be
    # megacore-sharded.
    Bp0 = _round_up(B, 16)                     # bf16 sublane-friendly
    tb = max(16, min(_round_up(tb, 16), Bp0))
    if two_cores and Bp0 // tb < 2 and Bp0 >= 32:
        tb = max(16, _round_up(Bp0 // 2, 16))
    Bp = _round_up(B, tb)
    nb, nk = Bp // tb, Kp // tk

    # Flatten NCHW -> (B, CHW) (a view; no copy) and pad only when needed.
    x = pixel_values.reshape(B, CHW).astype(jnp.float32)
    if Bp != B or Kp != CHW:
        x = jnp.pad(x, ((0, Bp - B), (0, Kp - CHW)))

    labels = label_ids.astype(jnp.int32)
    if Bp != B:
        labels = jnp.pad(labels, (0, Bp - B))
    labels = labels.reshape(Bp, 1)

    kernel = functools.partial(_clip_kernel, num_labels=L)

    scores_p, loss_rows = pl.pallas_call(
        kernel,
        out_shape=(jax.ShapeDtypeStruct((Bp, Lp), jnp.float32),
                   jax.ShapeDtypeStruct((Bp, 128), jnp.float32)),
        grid_spec=pltpu.PrefetchScalarGridSpec(
            num_scalar_prefetch=0,
            grid=(nb, nk),                                   # batch outer, K inner
            in_specs=[
                pl.BlockSpec(memory_space=pltpu.MemorySpace.SMEM),     # exp(logit_scale)
                pl.BlockSpec((tb, tk), lambda i, k: (i, k)),           # pixels (f32)
                pl.BlockSpec((tk, D), lambda i, k: (k, 0)),            # weight (bf16)
                pl.BlockSpec((D, Lp), lambda i, k: (0, 0),
                             pipeline_mode=pl.Buffered(1)),            # norm text^T (bf16)
                pl.BlockSpec((tb, 1), lambda i, k: (i, 0),
                             pipeline_mode=pl.Buffered(1)),            # label ids
            ],
            out_specs=(
                pl.BlockSpec((tb, Lp), lambda i, k: (i, 0)),           # scores
                pl.BlockSpec((tb, 128), lambda i, k: (i, 0)),          # per-row CE
            ),
            scratch_shapes=[pltpu.VMEM((tb, D), jnp.float32)],         # img-feat acc
        ),
        compiler_params=pltpu.CompilerParams(
            dimension_semantics=("parallel", "arbitrary"),
            vmem_limit_bytes=vmem_limit),
    )(prepared["scale_exp"], x, prepared["w"], prepared["txt_t"], labels)

    scores = scores_p[:B, :L]
    loss = jnp.sum(loss_rows[:B, 0]) / B
    return scores, loss


def _reference(pixel_values, w_img, text_emb, logit_scale, label_ids):
    """Pure-JAX reference mirroring the module math (with the same bf16 casts)."""
    B = pixel_values.shape[0]
    x = pixel_values.reshape(B, -1).astype(jnp.bfloat16).astype(jnp.float32)
    w = w_img.astype(jnp.bfloat16).astype(jnp.float32)
    img = x @ w
    img = img / jnp.linalg.norm(img, axis=-1, keepdims=True)
    img = img.astype(jnp.bfloat16).astype(jnp.float32)
    txt = text_emb.astype(jnp.float32)
    txt = txt / jnp.linalg.norm(txt, axis=-1, keepdims=True)
    txt = txt.astype(jnp.bfloat16).astype(jnp.float32)
    scores = (img @ txt.T) * jnp.exp(logit_scale)
    lse = jax.scipy.special.logsumexp(scores, axis=-1)
    picked = scores[jnp.arange(B), label_ids]
    loss = jnp.mean(lse - picked)
    return scores, loss


if __name__ == "__main__":
    # Small synthetic shapes consistent with the module's forward():
    #   pixel_values: (B, 3, H, W); embedding dim D; num_labels L.
    B, C, H, W = 2, 3, 16, 16
    D, L = 32, 8

    key = jax.random.PRNGKey(0)
    k1, k2, k3 = jax.random.split(key, 3)

    pixel_values = jax.random.normal(k1, (B, C, H, W), dtype=jnp.float32)
    # Deterministic synthetic parameters standing in for the CLIP towers.
    w_img = jax.random.normal(k2, (C * H * W, D), dtype=jnp.float32) * 0.02
    text_emb = jax.random.normal(k3, (L, D), dtype=jnp.float32)
    logit_scale = jnp.log(jnp.asarray(1.0 / 0.07, jnp.float32))  # CLIP default
    label_ids = jnp.array([1, 3], dtype=jnp.int32)

    # One-time prep (mirrors the module's cached text embeddings), then forward.
    prepared = prepare_clip_retriever(w_img, text_emb, logit_scale)
    scores, loss = clip_label_retriever(prepared, pixel_values, label_ids)
    jax.block_until_ready((scores, loss))

    ref_scores, ref_loss = _reference(pixel_values, w_img, text_emb,
                                      logit_scale, label_ids)
    assert jnp.allclose(scores, ref_scores, atol=5e-3, rtol=5e-3), "scores mismatch"
    assert jnp.allclose(loss, ref_loss, atol=5e-3, rtol=5e-3), "loss mismatch"

    print("KERNEL_OK")
</pallas_src>

<mosaic_0001>
module attributes {stable_mosaic.version = 11 : i64} {
  func.func @_clip_kernel(%arg0: i32, %arg1: i32, %arg2: memref<1xf32, #tpu.memory_space<smem>>, %arg3: memref<16x768xf32, #tpu.memory_space<vmem>>, %arg4: memref<768x32xbf16, #tpu.memory_space<vmem>>, %arg5: memref<32x128xbf16, #tpu.memory_space<vmem>>, %arg6: memref<16x1xi32, #tpu.memory_space<vmem>>, %arg7: memref<16x128xf32, #tpu.memory_space<vmem>>, %arg8: memref<16x128xf32, #tpu.memory_space<vmem>>, %arg9: memref<16x32xf32, #tpu.memory_space<vmem>>) attributes {dimension_semantics = [#tpu.dimension_semantics<parallel>, #tpu.dimension_semantics<arbitrary>], iteration_bounds = array<i64: 1, 1>, scalar_prefetch = 0 : i64, scratch_operands = 1 : i64, tpu.core_type = #tpu.core_type<tc>, window_params = [{transform_indices = @transform_0, window_bounds = array<i64: 1>}, {transform_indices = @transform_1, window_bounds = array<i64: 16, 768>}, {transform_indices = @transform_2, window_bounds = array<i64: 768, 32>}, {pipeline_mode = #tpu.pipeline_mode<synchronous>, transform_indices = @transform_3, window_bounds = array<i64: 32, 128>}, {pipeline_mode = #tpu.pipeline_mode<synchronous>, transform_indices = @transform_4, window_bounds = array<i64: 16, 1>}, {transform_indices = @transform_5, window_bounds = array<i64: 16, 128>}, {transform_indices = @transform_6, window_bounds = array<i64: 16, 128>}]} {
    %c0_i32 = arith.constant 0 : i32
    %0 = arith.cmpi eq, %arg1, %c0_i32 : i32
    %1 = arith.extui %0 : i1 to i32
    %c0_i32_0 = arith.constant 0 : i32
    %2 = arith.cmpi ne, %1, %c0_i32_0 : i32
    scf.if %2 {
      %cst_10 = arith.constant 0.000000e+00 : f32
      %13 = vector.broadcast %cst_10 : f32 to vector<16x32xf32>
      %c0_11 = arith.constant 0 : index
      %c0_12 = arith.constant 0 : index
      %14 = vector.load %arg9[%c0_11, %c0_12] : memref<16x32xf32, #tpu.memory_space<vmem>>, vector<16x32xf32>
      tpu.vector_store %arg9[%c0_11, %c0_12], %13 {strides = array<i32>} : memref<16x32xf32, #tpu.memory_space<vmem>>, vector<16x32xf32>,
    } else {
    }
    %c0 = arith.constant 0 : index
    %c0_1 = arith.constant 0 : index
    %3 = vector.load %arg9[%c0, %c0_1] : memref<16x32xf32, #tpu.memory_space<vmem>>, vector<16x32xf32>
    %c0_2 = arith.constant 0 : index
    %c0_3 = arith.constant 0 : index
    %4 = vector.load %arg3[%c0_2, %c0_3] : memref<16x768xf32, #tpu.memory_space<vmem>>, vector<16x768xf32>
    %5 = arith.truncf %4 : vector<16x768xf32> to vector<16x768xbf16>
    %c0_4 = arith.constant 0 : index
    %c0_5 = arith.constant 0 : index
    %6 = vector.load %arg4[%c0_4, %c0_5] : memref<768x32xbf16, #tpu.memory_space<vmem>>, vector<768x32xbf16>
    %cst = arith.constant dense<0.000000e+00> : vector<16x32xf32>
    %7 = tpu.matmul %5, %6, %cst {dimension_numbers = #tpu.dot_dimension_numbers<[1], [0], [0], [1], [0, 0, 1, 1], [], []>} : vector<16x768xbf16>, vector<768x32xbf16>, vector<16x32xf32> -> vector<16x32xf32>
    %8 = arith.addf %3, %7 : vector<16x32xf32>
    %c0_6 = arith.constant 0 : index
    %c0_7 = arith.constant 0 : index
    %9 = vector.load %arg9[%c0_6, %c0_7] : memref<16x32xf32, #tpu.memory_space<vmem>>, vector<16x32xf32>
    tpu.vector_store %arg9[%c0_6, %c0_7], %8 {strides = array<i32>} : memref<16x32xf32, #tpu.memory_space<vmem>>, vector<16x32xf32>,
    %c0_i32_8 = arith.constant 0 : i32
    %10 = arith.cmpi eq, %arg1, %c0_i32_8 : i32
    %11 = arith.extui %10 : i1 to i32
    %c0_i32_9 = arith.constant 0 : i32
    %12 = arith.cmpi ne, %11, %c0_i32_9 : i32
    scf.if %12 {
      %c0_10 = arith.constant 0 : index
      %c0_11 = arith.constant 0 : index
      %13 = vector.load %arg9[%c0_10, %c0_11] : memref<16x32xf32, #tpu.memory_space<vmem>>, vector<16x32xf32>
      %14 = arith.mulf %13, %13 : vector<16x32xf32>
      %cst_12 = arith.constant dense<0.000000e+00> : vector<16xf32>
      %15 = vector.multi_reduction <add>, %14, %cst_12 [1] : vector<16x32xf32> to vector<16xf32>
      %16 = vector.shape_cast %15 : vector<16xf32> to vector<16x1xf32>
      %cst_13 = arith.constant 1.000000e-30 : f32
      %17 = vector.broadcast %cst_13 : f32 to vector<16x1xf32>
      %18 = arith.addf %16, %17 : vector<16x1xf32>
      %19 = math.rsqrt %18 : vector<16x1xf32>
      %20 = vector.broadcast %19 : vector<16x1xf32> to vector<16x32xf32>
      %21 = arith.mulf %13, %20 : vector<16x32xf32>
      %22 = arith.truncf %21 : vector<16x32xf32> to vector<16x32xbf16>
      %c0_14 = arith.constant 0 : index
      %23 = memref.load %arg2[%c0_14] : memref<1xf32, #tpu.memory_space<smem>>
      %c0_15 = arith.constant 0 : index
      %c0_16 = arith.constant 0 : index
      %24 = vector.load %arg5[%c0_15, %c0_16] : memref<32x128xbf16, #tpu.memory_space<vmem>>, vector<32x128xbf16>
      %cst_17 = arith.constant dense<0.000000e+00> : vector<16x128xf32>
      %25 = tpu.matmul %22, %24, %cst_17 {dimension_numbers = #tpu.dot_dimension_numbers<[1], [0], [0], [1], [0, 0, 1, 1], [], []>} : vector<16x32xbf16>, vector<32x128xbf16>, vector<16x128xf32> -> vector<16x128xf32>
      %26 = vector.broadcast %23 : f32 to vector<16x128xf32>
      %27 = arith.mulf %25, %26 : vector<16x128xf32>
      %c0_18 = arith.constant 0 : index
      %c0_19 = arith.constant 0 : index
      %28 = vector.load %arg7[%c0_18, %c0_19] : memref<16x128xf32, #tpu.memory_space<vmem>>, vector<16x128xf32>
      tpu.vector_store %arg7[%c0_18, %c0_19], %27 {strides = array<i32>} : memref<16x128xf32, #tpu.memory_space<vmem>>, vector<16x128xf32>,
      %29 = tpu.iota {dimensions = array<i32: 1>} : vector<16x128xi32>
      %c8_i32 = arith.constant 8 : i32
      %30 = vector.broadcast %c8_i32 : i32 to vector<16x128xi32>
      %31 = arith.cmpi slt, %29, %30 : vector<16x128xi32>
      %cst_20 = arith.constant -1.000000e+30 : f32
      %32 = vector.broadcast %cst_20 : f32 to vector<16x128xf32>
      %33 = arith.select %31, %27, %32 : vector<16x128xi1>, vector<16x128xf32>
      %cst_21 = arith.constant dense<0xFF800000> : vector<16xf32>
      %34 = vector.multi_reduction <maximumf>, %33, %cst_21 [1] : vector<16x128xf32> to vector<16xf32>
      %35 = vector.shape_cast %34 : vector<16xf32> to vector<16x1xf32>
      %36 = vector.broadcast %35 : vector<16x1xf32> to vector<16x128xf32>
      %37 = arith.subf %33, %36 : vector<16x128xf32>
      %38 = math.exp %37 : vector<16x128xf32>
      %cst_22 = arith.constant dense<0.000000e+00> : vector<16xf32>
      %39 = vector.multi_reduction <add>, %38, %cst_22 [1] : vector<16x128xf32> to vector<16xf32>
      %40 = vector.shape_cast %39 : vector<16xf32> to vector<16x1xf32>
      %41 = math.log %40 : vector<16x1xf32>
      %42 = arith.addf %35, %41 : vector<16x1xf32>
      %c0_23 = arith.constant 0 : index
      %c0_24 = arith.constant 0 : index
      %43 = vector.load %arg6[%c0_23, %c0_24] : memref<16x1xi32, #tpu.memory_space<vmem>>, vector<16x1xi32>
      %44 = vector.broadcast %43 : vector<16x1xi32> to vector<16x128xi32>
      %45 = arith.cmpi eq, %29, %44 : vector<16x128xi32>
      %46 = arith.extui %45 : vector<16x128xi1> to vector<16x128xi32>
      %47 = arith.sitofp %46 : vector<16x128xi32> to vector<16x128xf32>
      %48 = arith.mulf %27, %47 : vector<16x128xf32>
      %cst_25 = arith.constant dense<0.000000e+00> : vector<16xf32>
      %49 = vector.multi_reduction <add>, %48, %cst_25 [1] : vector<16x128xf32> to vector<16xf32>
      %50 = vector.shape_cast %49 : vector<16xf32> to vector<16x1xf32>
      %51 = arith.subf %42, %50 : vector<16x1xf32>
      %52 = vector.shape_cast %51 : vector<16x1xf32> to vector<16x1xf32>
      %53 = vector.broadcast %52 : vector<16x1xf32> to vector<16x128xf32>
      %c0_26 = arith.constant 0 : index
      %c0_27 = arith.constant 0 : index
      %54 = vector.load %arg8[%c0_26, %c0_27] : memref<16x128xf32, #tpu.memory_space<vmem>>, vector<16x128xf32>
      tpu.vector_store %arg8[%c0_26, %c0_27], %53 {strides = array<i32>} : memref<16x128xf32, #tpu.memory_space<vmem>>, vector<16x128xf32>,
    } else {
    }
    return
  }
  func.func @transform_0(%arg0: i32, %arg1: i32) -> i32 {
    %c0_i32 = arith.constant 0 : i32
    %c0_i32_0 = arith.constant 0 : i32
    return %c0_i32 : i32
  }
  func.func @transform_1(%arg0: i32, %arg1: i32) -> (i32, i32) {
    %c0_i32 = arith.constant 0 : i32
    return %arg0, %arg1 : i32, i32
  }
  func.func @transform_2(%arg0: i32, %arg1: i32) -> (i32, i32) {
    %c0_i32 = arith.constant 0 : i32
    %c0_i32_0 = arith.constant 0 : i32
    return %arg1, %c0_i32 : i32, i32
  }
  func.func @transform_3(%arg0: i32, %arg1: i32) -> (i32, i32) {
    %c0_i32 = arith.constant 0 : i32
    %c0_i32_0 = arith.constant 0 : i32
    %c0_i32_1 = arith.constant 0 : i32
    return %c0_i32, %c0_i32_0 : i32, i32
  }
  func.func @transform_4(%arg0: i32, %arg1: i32) -> (i32, i32) {
    %c0_i32 = arith.constant 0 : i32
    %c0_i32_0 = arith.constant 0 : i32
    return %arg0, %c0_i32 : i32, i32
  }
  func.func @transform_5(%arg0: i32, %arg1: i32) -> (i32, i32) {
    %c0_i32 = arith.constant 0 : i32
    %c0_i32_0 = arith.constant 0 : i32
    return %arg0, %c0_i32 : i32, i32
  }
  func.func @transform_6(%arg0: i32, %arg1: i32) -> (i32, i32) {
    %c0_i32 = arith.constant 0 : i32
    %c0_i32_0 = arith.constant 0 : i32
    return %arg0, %c0_i32 : i32, i32
  }
}

</mosaic_0001>

<llo_original>
// kernel: tpu_custom_call.1
$region0: #{tpu_custom_call.1}
  #allocation0 [shape = 'u32[]', space=smem, size = 0x4, offset = 0x4, fixed_abs, tag = 'smem constant byte address 0x4 - core index']
  #allocation1 [shape = 'u32[72,128]{1,0:T(1,128)}', space=vmem, size = 0x9000, scoped, tag = 'internal scratch']
  #allocation2 [shape = 'f32[16,32]{1,0:T(8,128)}', space=vmem, size = 0x2000, scoped, tag = 'scratch operand']
  #allocation3 [shape = 'f32[1]{0:T(128)S(6)}', space=smem, size = 0x200, scoped, tag = 'scoped memory for tpu_custom_call.1']
  %s0 = inlined_call_operand.<no memory space> [shape: f32[1], index: 0, kind: input, shape index: {}]
  %s1 = inlined_call_operand.vmem [shape: f32[16,768], index: 1, kind: input, shape index: {}]
  %s2 = inlined_call_operand.vmem [shape: bf16[768,32], index: 2, kind: input, shape index: {}]
  %s3 = inlined_call_operand.vmem [shape: bf16[32,128], index: 3, kind: input, shape index: {}]
  %s4 = inlined_call_operand.vmem [shape: s32[16,1], index: 4, kind: input, shape index: {}]
  %s5 = inlined_call_operand.hbm [shape: f32[16,128], index: 5, kind: output, shape index: {0}]
  %s6 = inlined_call_operand.hbm [shape: f32[16,128], index: 6, kind: output, shape index: {1}]
  %7 = xla_tuple %s5, %s6
  %s8 = sld [smem:[#allocation0]]
  $region46: #{tpu_custom_call.1} parent=0
    _
  %s10 = ssub.s32 1, %s8
  %s11 = scalar_select 0, %s10, %s8
  %12 = sst [smem:[#allocation3]] %s0
  $region1: #{tpu_custom_call.1} parent=0
    #allocation4 [shape = 'u8[8192]{0}', space=vmem, size = 0x2000, scoped, tag = 'output window, operand 0, single buffered']
    #allocation5 [shape = 's32[1]{0}', space=sflag, size = 0x4, scoped, tag = 'scoped memory for tpu_custom_call.1']
    #allocation6 [shape = 'u8[8192]{0}', space=vmem, size = 0x2000, scoped, tag = 'output window, operand 1, single buffered']
    #allocation7 [shape = 's32[1]{0}', space=sflag, size = 0x4, scoped, tag = 'scoped memory for tpu_custom_call.1']
    %13 = vsyncpa [#allocation5], 0
    %14 = vsyncpa [#allocation7], 0
    // Predicated region
    $region2: #{tpu_custom_call.1} parent=1 // pred_check
      _
    $region3: #{tpu_custom_call.1} parent=1 // pred_check_branch
      %16 = sbr.rel (0) target = $region5
    $region4: #{tpu_custom_call.1} parent=1 // pred_region
      _
    $region5: #{tpu_custom_call.1} parent=1 // pred_fallthru
      _
    // Predicated region
    $region6: #{tpu_custom_call.1} parent=1 // pred_check
      _
    $region7: #{tpu_custom_call.1} parent=1 // pred_check_branch
      %18 = sbr.rel (0) target = $region9
    $region8: #{tpu_custom_call.1} parent=1 // pred_region
      _
    $region9: #{tpu_custom_call.1} parent=1 // pred_fallthru
      _
    // Predicated region
    $region10: #{tpu_custom_call.1} parent=1 // pred_check
      _
    $region11: #{tpu_custom_call.1} parent=1 // pred_check_branch
      %20 = sbr.rel (0) target = $region13
    $region12: #{tpu_custom_call.1} parent=1 // pred_region
      _
    $region13: #{tpu_custom_call.1} parent=1 // pred_fallthru
      _
    // Predicated region
    $region14: #{tpu_custom_call.1} parent=1 // pred_check
      _
    $region15: #{tpu_custom_call.1} parent=1 // pred_check_branch
      %22 = sbr.rel (0) target = $region17
    $region16: #{tpu_custom_call.1} parent=1 // pred_region
      _
    $region17: #{tpu_custom_call.1} parent=1 // pred_fallthru
      _
    // Predicated region
    $region18: #{tpu_custom_call.1} parent=1 // pred_check
      _
    $region19: #{tpu_custom_call.1} parent=1 // pred_check_branch
      %24 = sbr.rel (0) target = $region21
    $region20: #{tpu_custom_call.1} parent=1 // pred_region
      _
    $region21: #{tpu_custom_call.1} parent=1 // pred_fallthru
      _
    %p26 = scmp.eq.s32.totalorder 0, 0
    // Predicated region
    $region22: #{tpu_custom_call.1} parent=1 // pred_check
      %p27 = pneg %p26
    $region23: #{tpu_custom_call.1} parent=1 // pred_check_branch
      %29 = sbr.rel (%p27) target = $region25
    $region24: #{tpu_custom_call.1} parent=1 // pred_region
      %vm30 = vcmask 261120
      %31 = vst.msk [vmem:[#allocation2] sm:$0xff] %vm30, 0.0
      %32 = vst.msk [vmem:[#allocation2 + $0x8] sm:$0xff] %vm30, 0.0
    $region25: #{tpu_custom_call.1} parent=1 // pred_fallthru
      _
    %v33 = vld [vmem:[#allocation2] sm:$0xff]
    %v34 = vld [vmem:[#allocation2 + $0x8] sm:$0xff]
    %v35 = vld [vmem:[%s1] sm:$0xff]
    %v36 = vld [vmem:[%s1 + $0x8] sm:$0xff]
    %v37 = vld [vmem:[%s1 + $0x10] sm:$0xff]
    %v38 = vld [vmem:[%s1 + $0x18] sm:$0xff]
    %v39 = vld [vmem:[%s1 + $0x20] sm:$0xff]
    %v40 = vld [vmem:[%s1 + $0x28] sm:$0xff]
    %v41 = vld [vmem:[%s1 + $0x30] sm:$0xff]
    %v42 = vld [vmem:[%s1 + $0x38] sm:$0xff]
    %v43 = vld [vmem:[%s1 + $0x40] sm:$0xff]
    %v44 = vld [vmem:[%s1 + $0x48] sm:$0xff]
    %v45 = vld [vmem:[%s1 + $0x50] sm:$0xff]
    %v46 = vld [vmem:[%s1 + $0x58] sm:$0xff]
    %v47 = vpack.c.bf16 %v41, %v35
    %v48 = vpack.c.bf16 %v42, %v36
    %v49 = vpack.c.bf16 %v43, %v37
    %v50 = vpack.c.bf16 %v44, %v38
    %v51 = vpack.c.bf16 %v45, %v39
    %v52 = vpack.c.bf16 %v46, %v40
    %v53 = vld [vmem:[%s2] sm:$0xf]
    %v54 = vld [vmem:[%s2 + $0x4] sm:$0xf]
    %v55 = vld [vmem:[%s2 + $0x8] sm:$0xf]
    %v56 = vld [vmem:[%s2 + $0xc] sm:$0xf]
    %v57 = vld [vmem:[%s2 + $0x10] sm:$0xf]
    %v58 = vld [vmem:[%s2 + $0x14] sm:$0xf]
    %v59 = vld [vmem:[%s2 + $0x18] sm:$0xf]
    %v60 = vld [vmem:[%s2 + $0x1c] sm:$0xf]
    %v61 = vld [vmem:[%s2 + $0x20] sm:$0xf]
    %v62 = vld [vmem:[%s2 + $0x24] sm:$0xf]
    %v63 = vld [vmem:[%s2 + $0x28] sm:$0xf]
    %v64 = vld [vmem:[%s2 + $0x2c] sm:$0xf]
    %v65 = vld [vmem:[%s2 + $0x30] sm:$0xf]
    %v66 = vld [vmem:[%s2 + $0x34] sm:$0xf]
    %v67 = vld [vmem:[%s2 + $0x38] sm:$0xf]
    %v68 = vld [vmem:[%s2 + $0x3c] sm:$0xf]
    %v69 = vld [vmem:[%s2 + $0x40] sm:$0xf]
    %v70 = vld [vmem:[%s2 + $0x44] sm:$0xf]
    %v71 = vld [vmem:[%s2 + $0x48] sm:$0xf]
    %v72 = vld [vmem:[%s2 + $0x4c] sm:$0xf]
    %v73 = vld [vmem:[%s2 + $0x50] sm:$0xf]
    %v74 = vld [vmem:[%s2 + $0x54] sm:$0xf]
    %v75 = vld [vmem:[%s2 + $0x58] sm:$0xf]
    %v76 = vld [vmem:[%s2 + $0x5c] sm:$0xf]
    %v77 = vld [vmem:[%s2 + $0x60] sm:$0xf]
    %v78 = vld [vmem:[%s2 + $0x64] sm:$0xf]
    %v79 = vld [vmem:[%s2 + $0x68] sm:$0xf]
    %v80 = vld [vmem:[%s2 + $0x6c] sm:$0xf]
    %v81 = vld [vmem:[%s2 + $0x70] sm:$0xf]
    %v82 = vld [vmem:[%s2 + $0x74] sm:$0xf]
    %v83 = vld [vmem:[%s2 + $0x78] sm:$0xf]
    %v84 = vld [vmem:[%s2 + $0x7c] sm:$0xf]
    %v85 = vld [vmem:[%s2 + $0x80] sm:$0xf]
    %v86 = vld [vmem:[%s2 + $0x84] sm:$0xf]
    %v87 = vld [vmem:[%s2 + $0x88] sm:$0xf]
    %v88 = vld [vmem:[%s2 + $0x8c] sm:$0xf]
    %v89 = vld [vmem:[%s2 + $0x90] sm:$0xf]
    %v90 = vld [vmem:[%s2 + $0x94] sm:$0xf]
    %v91 = vld [vmem:[%s2 + $0x98] sm:$0xf]
    %v92 = vld [vmem:[%s2 + $0x9c] sm:$0xf]
    %v93 = vld [vmem:[%s2 + $0xa0] sm:$0xf]
    %v94 = vld [vmem:[%s2 + $0xa4] sm:$0xf]
    %v95 = vld [vmem:[%s2 + $0xa8] sm:$0xf]
    %v96 = vld [vmem:[%s2 + $0xac] sm:$0xf]
    %v97 = vld [vmem:[%s2 + $0xb0] sm:$0xf]
    %v98 = vld [vmem:[%s2 + $0xb4] sm:$0xf]
    %v99 = vld [vmem:[%s2 + $0xb8] sm:$0xf]
    %v100 = vld [vmem:[%s2 + $0xbc] sm:$0xf]
    %v101 = vld [vmem:[%s2 + $0xc0] sm:$0xf]
    %v102 = vld [vmem:[%s2 + $0xc4] sm:$0xf]
    %v103 = vld [vmem:[%s2 + $0xc8] sm:$0xf]
    %v104 = vld [vmem:[%s2 + $0xcc] sm:$0xf]
    %v105 = vld [vmem:[%s2 + $0xd0] sm:$0xf]
    %v106 = vld [vmem:[%s2 + $0xd4] sm:$0xf]
    %v107 = vld [vmem:[%s2 + $0xd8] sm:$0xf]
    %v108 = vld [vmem:[%s2 + $0xdc] sm:$0xf]
    %v109 = vld [vmem:[%s2 + $0xe0] sm:$0xf]
    %v110 = vld [vmem:[%s2 + $0xe4] sm:$0xf]
    %v111 = vld [vmem:[%s2 + $0xe8] sm:$0xf]
    %v112 = vld [vmem:[%s2 + $0xec] sm:$0xf]
    %v113 = vld [vmem:[%s2 + $0xf0] sm:$0xf]
    %v114 = vld [vmem:[%s2 + $0xf4] sm:$0xf]
    %v115 = vld [vmem:[%s2 + $0xf8] sm:$0xf]
    %v116 = vld [vmem:[%s2 + $0xfc] sm:$0xf]
    %v117 = vld [vmem:[%s2 + $0x100] sm:$0xf]
    %v118 = vld [vmem:[%s2 + $0x104] sm:$0xf]
    %v119 = vld [vmem:[%s2 + $0x108] sm:$0xf]
    %v120 = vld [vmem:[%s2 + $0x10c] sm:$0xf]
    %v121 = vld [vmem:[%s2 + $0x110] sm:$0xf]
    %v122 = vld [vmem:[%s2 + $0x114] sm:$0xf]
    %v123 = vld [vmem:[%s2 + $0x118] sm:$0xf]
    %v124 = vld [vmem:[%s2 + $0x11c] sm:$0xf]
    %v125 = vld [vmem:[%s2 + $0x120] sm:$0xf]
    %v126 = vld [vmem:[%s2 + $0x124] sm:$0xf]
    %v127 = vld [vmem:[%s2 + $0x128] sm:$0xf]
    %v128 = vld [vmem:[%s2 + $0x12c] sm:$0xf]
    %v129 = vld [vmem:[%s2 + $0x130] sm:$0xf]
    %v130 = vld [vmem:[%s2 + $0x134] sm:$0xf]
    %v131 = vld [vmem:[%s2 + $0x138] sm:$0xf]
    %v132 = vld [vmem:[%s2 + $0x13c] sm:$0xf]
    %v133 = vld [vmem:[%s2 + $0x140] sm:$0xf]
    %v134 = vld [vmem:[%s2 + $0x144] sm:$0xf]
    %v135 = vld [vmem:[%s2 + $0x148] sm:$0xf]
    %v136 = vld [vmem:[%s2 + $0x14c] sm:$0xf]
    %v137 = vld [vmem:[%s2 + $0x150] sm:$0xf]
    %v138 = vld [vmem:[%s2 + $0x154] sm:$0xf]
    %v139 = vld [vmem:[%s2 + $0x158] sm:$0xf]
    %v140 = vld [vmem:[%s2 + $0x15c] sm:$0xf]
    %v141 = vld [vmem:[%s2 + $0x160] sm:$0xf]
    %v142 = vld [vmem:[%s2 + $0x164] sm:$0xf]
    %v143 = vld [vmem:[%s2 + $0x168] sm:$0xf]
    %v144 = vld [vmem:[%s2 + $0x16c] sm:$0xf]
    %v145 = vld [vmem:[%s2 + $0x170] sm:$0xf]
    %v146 = vld [vmem:[%s2 + $0x174] sm:$0xf]
    %v147 = vld [vmem:[%s2 + $0x178] sm:$0xf]
    %v148 = vld [vmem:[%s2 + $0x17c] sm:$0xf]
    %v245 = vunpack.c.l.b16 %v53
    %v246 = vunpack.c.l.b16 %v54
    %v247 = vunpack.c.l.b16 %v55
    %v248 = vunpack.c.l.b16 %v56
    %v249 = vunpack.c.l.b16 %v57
    %v250 = vunpack.c.l.b16 %v58
    %v251 = vunpack.c.l.b16 %v59
    %v252 = vunpack.c.l.b16 %v60
    %v253 = vunpack.c.l.b16 %v61
    %v254 = vunpack.c.l.b16 %v62
    %v255 = vunpack.c.l.b16 %v63
    %v256 = vunpack.c.l.b16 %v64
    %v257 = vunpack.c.l.b16 %v65
    %v258 = vunpack.c.l.b16 %v66
    %v259 = vunpack.c.l.b16 %v67
    %v260 = vunpack.c.l.b16 %v68
    %v261 = vunpack.c.l.b16 %v69
    %v262 = vunpack.c.l.b16 %v70
    %v263 = vunpack.c.l.b16 %v71
    %v264 = vunpack.c.l.b16 %v72
    %v265 = vunpack.c.l.b16 %v73
    %v266 = vunpack.c.l.b16 %v74
    %v267 = vunpack.c.l.b16 %v75
    %v268 = vunpack.c.l.b16 %v76
    %v269 = vunpack.c.l.b16 %v77
    %v270 = vunpack.c.l.b16 %v78
    %v271 = vunpack.c.l.b16 %v79
    %v272 = vunpack.c.l.b16 %v80
    %v273 = vunpack.c.l.b16 %v81
    %v274 = vunpack.c.l.b16 %v82
    %v275 = vunpack.c.l.b16 %v83
    %v276 = vunpack.c.l.b16 %v84
    %v277 = vunpack.c.l.b16 %v85
    %v278 = vunpack.c.l.b16 %v86
    %v279 = vunpack.c.l.b16 %v87
    %v280 = vunpack.c.l.b16 %v88
    %v281 = vunpack.c.l.b16 %v89
    %v282 = vunpack.c.l.b16 %v90
    %v283 = vunpack.c.l.b16 %v91
    %v284 = vunpack.c.l.b16 %v92
    %v285 = vunpack.c.l.b16 %v93
    %v286 = vunpack.c.l.b16 %v94
    %v287 = vunpack.c.l.b16 %v95
    %v288 = vunpack.c.l.b16 %v96
    %v289 = vunpack.c.l.b16 %v97
    %v290 = vunpack.c.l.b16 %v98
    %v291 = vunpack.c.l.b16 %v99
    %v292 = vunpack.c.l.b16 %v100
    %v293 = vunpack.c.l.b16 %v101
    %v294 = vunpack.c.l.b16 %v102
    %v295 = vunpack.c.l.b16 %v103
    %v296 = vunpack.c.l.b16 %v104
    %v297 = vunpack.c.l.b16 %v105
    %v298 = vunpack.c.l.b16 %v106
    %v299 = vunpack.c.l.b16 %v107
    %v300 = vunpack.c.l.b16 %v108
    %v301 = vunpack.c.l.b16 %v109
    %v302 = vunpack.c.l.b16 %v110
    %v303 = vunpack.c.l.b16 %v111
    %v304 = vunpack.c.l.b16 %v112
    %v305 = vunpack.c.l.b16 %v113
    %v306 = vunpack.c.l.b16 %v114
    %v307 = vunpack.c.l.b16 %v115
    %v308 = vunpack.c.l.b16 %v116
    %v309 = vunpack.c.l.b16 %v117
    %v310 = vunpack.c.l.b16 %v118
    %v311 = vunpack.c.l.b16 %v119
    %v312 = vunpack.c.l.b16 %v120
    %v313 = vunpack.c.l.b16 %v121
    %v314 = vunpack.c.l.b16 %v122
    %v315 = vunpack.c.l.b16 %v123
    %v316 = vunpack.c.l.b16 %v124
    %v317 = vunpack.c.l.b16 %v125
    %v318 = vunpack.c.l.b16 %v126
    %v319 = vunpack.c.l.b16 %v127
    %v320 = vunpack.c.l.b16 %v128
    %v321 = vunpack.c.l.b16 %v129
    %v322 = vunpack.c.l.b16 %v130
    %v323 = vunpack.c.l.b16 %v131
    %v324 = vunpack.c.l.b16 %v132
    %v325 = vunpack.c.l.b16 %v133
    %v326 = vunpack.c.l.b16 %v134
    %v327 = vunpack.c.l.b16 %v135
    %v328 = vunpack.c.l.b16 %v136
    %v329 = vunpack.c.l.b16 %v137
    %v330 = vunpack.c.l.b16 %v138
    %v331 = vunpack.c.l.b16 %v139
    %v332 = vunpack.c.l.b16 %v140
    %v333 = vunpack.c.l.b16 %v141
    %v334 = vunpack.c.l.b16 %v142
    %v335 = vunpack.c.l.b16 %v143
    %v336 = vunpack.c.l.b16 %v144
    %v337 = vunpack.c.l.b16 %v145
    %v338 = vunpack.c.l.b16 %v146
    %v339 = vunpack.c.l.b16 %v147
    %v340 = vunpack.c.l.b16 %v148
    %v341 = vpack.c.b16 %v246, %v245
    %v342 = vpack.c.b16 %v248, %v247
    %v343 = vpack.c.b16 %v250, %v249
    %v344 = vpack.c.b16 %v252, %v251
    %v345 = vpack.c.b16 %v254, %v253
    %v346 = vpack.c.b16 %v256, %v255
    %v347 = vpack.c.b16 %v258, %v257
    %v348 = vpack.c.b16 %v260, %v259
    %v349 = vpack.c.b16 %v262, %v261
    %v350 = vpack.c.b16 %v264, %v263
    %v351 = vpack.c.b16 %v266, %v265
    %v352 = vpack.c.b16 %v268, %v267
    %v353 = vpack.c.b16 %v270, %v269
    %v354 = vpack.c.b16 %v272, %v271
    %v355 = vpack.c.b16 %v274, %v273
    %v356 = vpack.c.b16 %v276, %v275
    %v357 = vpack.c.b16 %v278, %v277
    %v358 = vpack.c.b16 %v280, %v279
    %v359 = vpack.c.b16 %v282, %v281
    %v360 = vpack.c.b16 %v284, %v283
    %v361 = vpack.c.b16 %v286, %v285
    %v362 = vpack.c.b16 %v288, %v287
    %v363 = vpack.c.b16 %v290, %v289
    %v364 = vpack.c.b16 %v292, %v291
    %v365 = vpack.c.b16 %v294, %v293
    %v366 = vpack.c.b16 %v296, %v295
    %v367 = vpack.c.b16 %v298, %v297
    %v368 = vpack.c.b16 %v300, %v299
    %v369 = vpack.c.b16 %v302, %v301
    %v370 = vpack.c.b16 %v304, %v303
    %v371 = vpack.c.b16 %v306, %v305
    %v372 = vpack.c.b16 %v308, %v307
    %v373 = vpack.c.b16 %v310, %v309
    %v374 = vpack.c.b16 %v312, %v311
    %v375 = vpack.c.b16 %v314, %v313
    %v376 = vpack.c.b16 %v316, %v315
    %v377 = vpack.c.b16 %v318, %v317
    %v378 = vpack.c.b16 %v320, %v319
    %v379 = vpack.c.b16 %v322, %v321
    %v380 = vpack.c.b16 %v324, %v323
    %v381 = vpack.c.b16 %v326, %v325
    %v382 = vpack.c.b16 %v328, %v327
    %v383 = vpack.c.b16 %v330, %v329
    %v384 = vpack.c.b16 %v332, %v331
    %v385 = vpack.c.b16 %v334, %v333
    %v386 = vpack.c.b16 %v336, %v335
    %v387 = vpack.c.b16 %v338, %v337
    %v388 = vpack.c.b16 %v340, %v339
    %437 = vmatpush.bf16.msra.mxu0 %v348
    %438 = vmatpush.bf16.msra.mxu0 %v347
    %439 = vmatpush.bf16.msra.mxu0 %v346
    %440 = vmatpush.bf16.msra.mxu0 %v345
    %441 = vmatpush.bf16.msra.mxu0 %v344
    %442 = vmatpush.bf16.msra.mxu0 %v343
    %443 = vmatpush.bf16.msra.mxu0 %v342
    %444 = vmatpush.bf16.msra.mxu0 %v341
    %445 = vmatmul.bf16.gmra.mxu0 %v47
    %v446 = vpop.f32.mrf.mxu0
    %v447 = vadd.f32 0.0, %v446
    %v448 = vpop.f32.mrf.mxu0
    %v449 = vadd.f32 0.0, %v448
    %450 = vdwg.mxu0
    %451 = vmatpush.bf16.msra.mxu0 %v356
    %452 = vmatpush.bf16.msra.mxu0 %v355
    %453 = vmatpush.bf16.msra.mxu0 %v354
    %454 = vmatpush.bf16.msra.mxu0 %v353
    %455 = vmatpush.bf16.msra.mxu0 %v352
    %456 = vmatpush.bf16.msra.mxu0 %v351
    %457 = vmatpush.bf16.msra.mxu0 %v350
    %458 = vmatpush.bf16.msra.mxu0 %v349
    %459 = vmatmul.bf16.gmra.mxu0 %v48
    %v460 = vpop.f32.mrf.mxu0
    %v461 = vadd.f32 %v447, %v460
    %v462 = vpop.f32.mrf.mxu0
    %v463 = vadd.f32 %v449, %v462
    %464 = vdwg.mxu0
    %465 = vmatpush.bf16.msra.mxu0 %v364
    %466 = vmatpush.bf16.msra.mxu0 %v363
    %467 = vmatpush.bf16.msra.mxu0 %v362
    %468 = vmatpush.bf16.msra.mxu0 %v361
    %469 = vmatpush.bf16.msra.mxu0 %v360
    %470 = vmatpush.bf16.msra.mxu0 %v359
    %471 = vmatpush.bf16.msra.mxu0 %v358
    %472 = vmatpush.bf16.msra.mxu0 %v357
    %473 = vmatmul.bf16.gmra.mxu0 %v49
    %v474 = vpop.f32.mrf.mxu0
    %v475 = vadd.f32 %v461, %v474
    %v476 = vpop.f32.mrf.mxu0
    %v477 = vadd.f32 %v463, %v476
    %478 = vdwg.mxu0
    %479 = vmatpush.bf16.msra.mxu0 %v372
    %480 = vmatpush.bf16.msra.mxu0 %v371
    %481 = vmatpush.bf16.msra.mxu0 %v370
    %482 = vmatpush.bf16.msra.mxu0 %v369
    %483 = vmatpush.bf16.msra.mxu0 %v368
    %484 = vmatpush.bf16.msra.mxu0 %v367
    %485 = vmatpush.bf16.msra.mxu0 %v366
    %486 = vmatpush.bf16.msra.mxu0 %v365
    %487 = vmatmul.bf16.gmra.mxu0 %v50
    %v488 = vpop.f32.mrf.mxu0
    %v489 = vadd.f32 %v475, %v488
    %v490 = vpop.f32.mrf.mxu0
    %v491 = vadd.f32 %v477, %v490
    %492 = vdwg.mxu0
    %493 = vmatpush.bf16.msra.mxu0 %v380
    %494 = vmatpush.bf16.msra.mxu0 %v379
    %495 = vmatpush.bf16.msra.mxu0 %v378
    %496 = vmatpush.bf16.msra.mxu0 %v377
    %497 = vmatpush.bf16.msra.mxu0 %v376
    %498 = vmatpush.bf16.msra.mxu0 %v375
    %499 = vmatpush.bf16.msra.mxu0 %v374
    %500 = vmatpush.bf16.msra.mxu0 %v373
    %501 = vmatmul.bf16.gmra.mxu0 %v51
    %v502 = vpop.f32.mrf.mxu0
    %v503 = vadd.f32 %v489, %v502
    %v504 = vpop.f32.mrf.mxu0
    %v505 = vadd.f32 %v491, %v504
    %506 = vdwg.mxu0
    %507 = vmatpush.bf16.msra.mxu0 %v388
    %508 = vmatpush.bf16.msra.mxu0 %v387
    %509 = vmatpush.bf16.msra.mxu0 %v386
    %510 = vmatpush.bf16.msra.mxu0 %v385
    %511 = vmatpush.bf16.msra.mxu0 %v384
    %512 = vmatpush.bf16.msra.mxu0 %v383
    %513 = vmatpush.bf16.msra.mxu0 %v382
    %514 = vmatpush.bf16.msra.mxu0 %v381
    %515 = vmatmul.bf16.gmra.mxu0 %v52
    %v516 = vpop.f32.mrf.mxu0
    %v517 = vadd.f32 %v503, %v516
    %v518 = vpop.f32.mrf.mxu0
    %v519 = vadd.f32 %v505, %v518
    %520 = vdwg.mxu0
    %v521 = vadd.f32 %v33, %v517
    %v522 = vadd.f32 %v34, %v519
    %vm523 = vcmask 261120
    %524 = vst.msk [vmem:[#allocation2] sm:$0xff] %vm523, %v521
    %525 = vst.msk [vmem:[#allocation2 + $0x8] sm:$0xff] %vm523, %v522
    // Predicated region
    $region26: #{tpu_custom_call.1} parent=1 // pred_check
      %p526 = pneg %p26
    $region27: #{tpu_custom_call.1} parent=1 // pred_check_branch
      %528 = sbr.rel (%p526) target = $region29
    $region28: #{tpu_custom_call.1} parent=1 // pred_region
      %v529 = vld [vmem:[#allocation2] sm:$0xff]
      %v530 = vld [vmem:[#allocation2 + $0x8] sm:$0xff]
      %v531 = vmul.f32 %v529, %v529
      %v532 = vmul.f32 %v530, %v530
      %v533 = vsel %vm523, %v531, 0.0
      %534 = vadd.xlane.f32.xlu0 %v533
      %v535 = vpop.xlane.xlu0 %534
      %v536 = vsel %vm523, %v532, 0.0
      %537 = vadd.xlane.f32.xlu0 %v536
      %v538 = vpop.xlane.xlu0 %537
      %v539 = vadd.f32 %v535, 1e-30
      %v540 = vadd.f32 %v538, 1e-30
      %v541 = vrsqrt.pop %v539
      %v542 = vmul.f32 %v541, %v539
      %v543 = vmul.f32 %v542, %v541
      %v544 = vmul.f32 0.5, %v543
      %v545 = vsub.f32 1.5, %v544
      %v546 = vmul.f32 %v541, %v545
      %vm547 = vweird.f32 %v539
      %vm548 = vweird.f32 %v541
      %vm549 = vmor %vm547, %vm548
      %v550 = vsel %vm549, %v541, %v546
      %v551 = vrsqrt.pop %v540
      %v552 = vmul.f32 %v551, %v540
      %v553 = vmul.f32 %v552, %v551
      %v554 = vmul.f32 0.5, %v553
      %v555 = vsub.f32 1.5, %v554
      %v556 = vmul.f32 %v551, %v555
      %vm557 = vweird.f32 %v540
      %vm558 = vweird.f32 %v551
      %vm559 = vmor %vm557, %vm558
      %v560 = vsel %vm559, %v551, %v556
      %v561 = vmul.f32 %v529, %v550
      %v562 = vmul.f32 %v530, %v560
      %v563 = vpack.c.bf16 %v562, %v561
      %s564 = sld [smem:[#allocation3]]
      %v565 = vld [vmem:[%s3] sm:$0xf]
      %v566 = vld [vmem:[%s3 + $0x4] sm:$0xf]
      %v567 = vld [vmem:[%s3 + $0x8] sm:$0xf]
      %v568 = vld [vmem:[%s3 + $0xc] sm:$0xf]
      %v573 = vunpack.c.l.b16 %v565
      %v574 = vunpack.c.l.b16 %v566
      %v575 = vunpack.c.l.b16 %v567
      %v576 = vunpack.c.l.b16 %v568
      %v577 = vpack.c.b16 %v574, %v573
      %v578 = vpack.c.b16 %v576, %v575
      %v582 = vsel %vm523, %v563, 0
      %584 = vmatpush.bf16.msra.mxu0 0
      %585 = vmatpush.bf16.msra.mxu0 0
      %586 = vmatpush.bf16.msra.mxu0 0
      %587 = vmatpush.bf16.msra.mxu0 0
      %588 = vmatpush.bf16.msra.mxu0 0
      %589 = vmatpush.bf16.msra.mxu0 0
      %590 = vmatpush.bf16.msra.mxu0 %v578
      %591 = vmatpush.bf16.msra.mxu0 %v577
      %592 = vmatmul.bf16.gmra.mxu0 %v582
      %v593 = vpop.f32.mrf.mxu0
      %v594 = vadd.f32 0.0, %v593
      %v595 = vpop.f32.mrf.mxu0
      %v596 = vadd.f32 0.0, %v595
      %597 = vdwg.mxu0
      %v598 = vstv %s564
      %v599 = vmul.f32 %v594, %v598
      %v600 = vmul.f32 %v596, %v598
      %601 = vst [vmem:[#allocation4] sm:$0xff] %v599
      %602 = vst [vmem:[#allocation4 + $0x8] sm:$0xff] %v600
      %v603 = vlaneseq
      %v604 = vand.u32 %v603, 127
      %vm605 = vcmp.lt.s32.totalorder %v604, 8
      %v606 = vsel %vm605, %v599, -1e+30
      %v607 = vsel %vm605, %v600, -1e+30
      %608 = vmax.xlane.f32.xlu0 %v606
      %v609 = vpop.xlane.xlu0 %608
      %610 = vmax.xlane.f32.xlu0 %v607
      %v611 = vpop.xlane.xlu0 %610
      %v612 = vsub.f32 %v606, %v609
      %v613 = vsub.f32 %v607, %v611
      %v614 = vmul.f32 %v612, 1.442695
      %v615 = vpow.pop %v614
      %v616 = vmul.f32 %v613, 1.442695
      %v617 = vpow.pop %v616
      %618 = vadd.xlane.f32.xlu0 %v615
      %v619 = vpop.xlane.xlu0 %618
      %620 = vadd.xlane.f32.xlu0 %v617
      %v621 = vpop.xlane.xlu0 %620
      %v622 = vlog2.pop %v619
      %v623 = vmul.f32 %v622, 0.6931472
      %v624 = vlog2.pop %v621
      %v625 = vmul.f32 %v624, 0.6931472
      %v626 = vadd.f32 %v609, %v623
      %v627 = vadd.f32 %v611, %v625
      %v628 = vld [vmem:[%s4] sm:$0xff]
      %v629 = vld [vmem:[%s4 + $0x8] sm:$0xff]
      %630 = vset.pattern.permute.xlu0 0
      %631 = vperm.xlu0 %630, %v628
      %v632 = vpop.permute.xlu0 %631
      %633 = vset.pattern.permute.xlu0 0
      %634 = vperm.xlu0 %633, %v629
      %v635 = vpop.permute.xlu0 %634
      %vm636 = vcmp.eq.s32.totalorder %v604, %v632
      %vm637 = vcmp.eq.s32.totalorder %v604, %v635
      %v638 = vsel %vm636, 1, 0
      %v639 = vsel %vm637, 1, 0
      %v640 = vcvt.s32.f32 %v638
      %v641 = vcvt.s32.f32 %v639
      %v642 = vmul.f32 %v599, %v640
      %v643 = vmul.f32 %v600, %v641
      %644 = vadd.xlane.f32.xlu0 %v642
      %v645 = vpop.xlane.xlu0 %644
      %646 = vadd.xlane.f32.xlu0 %v643
      %v647 = vpop.xlane.xlu0 %646
      %v648 = vsub.f32 %v626, %v645
      %v649 = vsub.f32 %v627, %v647
      %650 = vst [vmem:[#allocation6] sm:$0xff] %v648
      %651 = vst [vmem:[#allocation6 + $0x8] sm:$0xff] %v649
    $region29: #{tpu_custom_call.1} parent=1 // pred_fallthru
      _
    // Predicated region
    $region30: #{tpu_custom_call.1} parent=1 // pred_check
      _
    $region31: #{tpu_custom_call.1} parent=1 // pred_check_branch
      %653 = sbr.rel (0) target = $region33
    $region32: #{tpu_custom_call.1} parent=1 // pred_region
      %655 = vsyncadd [#allocation5], 0
      %s656 = sshll.u32 [#allocation4], 4
      %s657 = int_to_ptr.vmem [resolvable:$true] %s656
      %s658 = sshll.u32 %s5, 4
      %s659 = int_to_ptr.hbm [resolvable:$true] %s658
      %664 = dma.vmem_to_hbm [thread:$0]  %s657, 256, %s659, [#allocation5], 128, 128, 8
    $region33: #{tpu_custom_call.1} parent=1 // pred_fallthru
      _
    // Predicated region
    $region34: #{tpu_custom_call.1} parent=1 // pred_check
      _
    $region35: #{tpu_custom_call.1} parent=1 // pred_check_branch
      %666 = sbr.rel (0) target = $region37
    $region36: #{tpu_custom_call.1} parent=1 // pred_region
      %668 = vsyncadd [#allocation7], 0
      %s669 = sshll.u32 [#allocation6], 4
      %s670 = int_to_ptr.vmem [resolvable:$true] %s669
      %s671 = sshll.u32 %s6, 4
      %s672 = int_to_ptr.hbm [resolvable:$true] %s671
      %677 = dma.vmem_to_hbm [thread:$0]  %s670, 256, %s672, [#allocation7], 128, 128, 8
    $region37: #{tpu_custom_call.1} parent=1 // pred_fallthru
      _
    // Predicated region
    $region38: #{tpu_custom_call.1} parent=1 // pred_check
      _
    $region39: #{tpu_custom_call.1} parent=1 // pred_check_branch
      %679 = sbr.rel (0) target = $region41
    $region40: #{tpu_custom_call.1} parent=1 // pred_region
      %681 = dma.done [#allocation5], 256
    $region41: #{tpu_custom_call.1} parent=1 // pred_fallthru
      _
    // Predicated region
    $region42: #{tpu_custom_call.1} parent=1 // pred_check
      _
    $region43: #{tpu_custom_call.1} parent=1 // pred_check_branch
      %683 = sbr.rel (0) target = $region45
    $region44: #{tpu_custom_call.1} parent=1 // pred_region
      %685 = dma.done [#allocation7], 256
    $region45: #{tpu_custom_call.1} parent=1 // pred_fallthru
      _
    %686 = vsyncpa [#allocation5], 1
    %687 = vsyncpa [#allocation7], 1

</llo_original>
